<compile_context>
chip_gen: v7x
topology: tpu7x:2x2x1
jax: 0.10.0
libtpu: 0.0.40
codegen_flags: <defaults>
</compile_context>

<pallas_src>
import functools

import jax
import jax.numpy as jnp
from jax.experimental import pallas as pl
from jax.experimental.pallas import tpu as pltpu

BN_EPS = 1e-5
NEG_SLOPE = 0.01   # nn.LeakyReLU default
LANE = 128


def _leaky_relu(x):
    return jnp.where(x > 0, x, NEG_SLOPE * x)


def _round_up(v, m):
    return (v + m - 1) // m * m


# ---------------------------------------------------------------------------
# Pass 1: per-row-tile single-pass sum / sum-of-squares of h2 = conv2(lrelu(conv1(x)))
# ---------------------------------------------------------------------------
def _stats_kernel(x_ref, w1_ref, b1_ref, w2_ref, b2_ref, o_ref, *, n_valid, tile_n):
    x = x_ref[...]
    h = _leaky_relu(jnp.dot(x, w1_ref[...], preferred_element_type=jnp.float32)
                    + b1_ref[...])
    h = jnp.dot(h, w2_ref[...], preferred_element_type=jnp.float32) + b2_ref[...]

    # Mask rows that are batch padding so they don't pollute the batch statistics.
    row = pl.program_id(0) * tile_n + jax.lax.broadcasted_iota(jnp.int32, h.shape, 0)
    mask = (row < n_valid).astype(jnp.float32)
    hm = h * mask
    s = jnp.sum(hm, axis=0, keepdims=True)        # sum(h)
    ss = jnp.sum(hm * h, axis=0, keepdims=True)   # sum(h*h)  (mask already applied)
    pad = jnp.zeros((6, h.shape[1]), jnp.float32)
    o_ref[...] = jnp.concatenate([s, ss, pad], axis=0)   # (8, C) lane-dense block


# ---------------------------------------------------------------------------
# Pass 2: forward with BN folded into (b2 - mean) and (W3 * inv_std)
# ---------------------------------------------------------------------------
def _fwd_kernel(x_ref, w1_ref, b1_ref, w2_ref, b2m_ref, w3s_ref, b3_ref, o_ref):
    x = x_ref[...]
    h = _leaky_relu(jnp.dot(x, w1_ref[...], preferred_element_type=jnp.float32)
                    + b1_ref[...])
    # b2m = b2 - batch_mean : BN mean-subtraction folded into the conv2 bias.
    h = jnp.dot(h, w2_ref[...], preferred_element_type=jnp.float32) + b2m_ref[...]
    # BN inv_std folded into w3s, legal because leaky_relu(a*x) == a*leaky_relu(x), a>0.
    h = _leaky_relu(h)
    out = jnp.dot(h, w3s_ref[...], preferred_element_type=jnp.float32) + b3_ref[...]
    o_ref[...] = out.astype(o_ref.dtype)


# ---------------------------------------------------------------------------
# Wrapper
# ---------------------------------------------------------------------------
def group_mlp_2lay(x, w1, b1, w2, b2, w3, b3, *, tile_n=256):
    """x: (N, in_features); w_i: (out_ch, in_ch) PyTorch layout; b_i: (out_ch,)."""
    N, c_in = x.shape
    c_mid = w1.shape[0]
    c_out = w3.shape[0]

    # Lane-dense (multiple-of-128) channel dims; zero padding is exact for all ops.
    c_in_p = _round_up(c_in, LANE)
    c_mid_p = _round_up(c_mid, LANE)
    c_out_p = _round_up(c_out, LANE)

    # Row tile: multiple of 8, capped by the (padded) batch.  For large N keep
    # tiles in the 256+ range; per-operand VMEM stays tiny (tile_n x 128 f32).
    tn = min(_round_up(tile_n, 8), _round_up(N, 8))
    n_pad = _round_up(N, tn)
    num_tiles = n_pad // tn

    f32 = jnp.float32
    xp = jnp.zeros((n_pad, c_in_p), f32).at[:N, :c_in].set(x.astype(f32))
    w1p = jnp.zeros((c_in_p, c_mid_p), f32).at[:c_in, :c_mid].set(w1.T.astype(f32))
    b1p = jnp.zeros((1, c_mid_p), f32).at[0, :c_mid].set(b1.astype(f32))
    w2p = jnp.zeros((c_mid_p, c_mid_p), f32).at[:c_mid, :c_mid].set(w2.T.astype(f32))
    b2p = jnp.zeros((1, c_mid_p), f32).at[0, :c_mid].set(b2.astype(f32))
    w3p = jnp.zeros((c_mid_p, c_out_p), f32).at[:c_mid, :c_out].set(w3.T.astype(f32))
    b3p = jnp.zeros((1, c_out_p), f32).at[0, :c_out].set(b3.astype(f32))

    resident2 = lambda shape: pl.BlockSpec(shape, lambda i: (0, 0))  # weights stay in VMEM

    # ---- Pass 1: global BN statistics (per-tile partials, reduced below) ----
    stats = pl.pallas_call(
        functools.partial(_stats_kernel, n_valid=N, tile_n=tn),
        out_shape=jax.ShapeDtypeStruct((num_tiles * 8, c_mid_p), jnp.float32),
        grid=(num_tiles,),
        in_specs=[
            pl.BlockSpec((tn, c_in_p), lambda i: (i, 0)),
            resident2((c_in_p, c_mid_p)),
            resident2((1, c_mid_p)),
            resident2((c_mid_p, c_mid_p)),
            resident2((1, c_mid_p)),
        ],
        out_specs=pl.BlockSpec((8, c_mid_p), lambda i: (i, 0)),
        compiler_params=pltpu.CompilerParams(dimension_semantics=("parallel",)),
    )(xp, w1p, b1p, w2p, b2p)

    p = stats.reshape(num_tiles, 8, c_mid_p)
    sum_h = jnp.sum(p[:, 0, :], axis=0)
    sum_hh = jnp.sum(p[:, 1, :], axis=0)
    mean = sum_h / N
    var = jnp.maximum(sum_hh / N - mean * mean, 0.0)   # biased (training-mode) variance
    inv_std = jax.lax.rsqrt(var + BN_EPS)

    b2m = b2p - mean[None, :]          # fold BN mean into conv2 bias
    w3s = w3p * inv_std[:, None]       # fold BN inv_std into conv3 weight

    # ---- Pass 2: normalized forward, lane-dense output tiles ----
    out_p = pl.pallas_call(
        _fwd_kernel,
        out_shape=jax.ShapeDtypeStruct((n_pad, c_out_p), jnp.float32),
        grid=(num_tiles,),
        in_specs=[
            pl.BlockSpec((tn, c_in_p), lambda i: (i, 0)),
            resident2((c_in_p, c_mid_p)),
            resident2((1, c_mid_p)),
            resident2((c_mid_p, c_mid_p)),
            resident2((1, c_mid_p)),
            resident2((c_mid_p, c_out_p)),
            resident2((1, c_out_p)),
        ],
        out_specs=pl.BlockSpec((tn, c_out_p), lambda i: (i, 0)),
        compiler_params=pltpu.CompilerParams(dimension_semantics=("parallel",)),
    )(xp, w1p, b1p, w2p, b2m, w3s, b3p)

    return out_p[:N, :c_out].astype(x.dtype)


# ---------------------------------------------------------------------------
# Pure-JAX reference (matches the PyTorch module in eval-of-dropout / train-BN mode)
# ---------------------------------------------------------------------------
def _reference(x, w1, b1, w2, b2, w3, b3):
    h = _leaky_relu(x @ w1.T + b1)
    h = h @ w2.T + b2
    mean = jnp.mean(h, axis=0, keepdims=True)
    var = jnp.mean((h - mean) ** 2, axis=0, keepdims=True)
    h = _leaky_relu((h - mean) / jnp.sqrt(var + BN_EPS))
    return h @ w3.T + b3


if __name__ == "__main__":
    N, C_IN, C_MID, C_OUT = 20, 16, 32, 16

    key = jax.random.PRNGKey(0)
    ks = jax.random.split(key, 7)

    def conv_init(k, shape, fan_in):
        bound = 1.0 / (fan_in ** 0.5)
        return jax.random.uniform(k, shape, jnp.float32, -bound, bound)

    x = jax.random.normal(ks[0], (N, C_IN), jnp.float32)
    w1 = conv_init(ks[1], (C_MID, C_IN), C_IN)
    b1 = conv_init(ks[2], (C_MID,), C_IN)
    w2 = conv_init(ks[3], (C_MID, C_MID), C_MID)
    b2 = conv_init(ks[4], (C_MID,), C_MID)
    w3 = conv_init(ks[5], (C_OUT, C_MID), C_MID)
    b3 = conv_init(ks[6], (C_OUT,), C_MID)

    # tile_n=8 exercises the multi-tile path (3 tiles, masked padded rows, global BN).
    out = group_mlp_2lay(x, w1, b1, w2, b2, w3, b3, tile_n=8)
    jax.block_until_ready(out)

    ref = _reference(x, w1, b1, w2, b2, w3, b3)
    assert out.shape == (N, C_OUT)
    assert jnp.allclose(out, ref, atol=1e-4, rtol=1e-4), float(jnp.max(jnp.abs(out - ref)))

    print("KERNEL_OK")
</pallas_src>

<mosaic_0001>
module attributes {stable_mosaic.version = 11 : i64} {
  func.func @_stats_kernel(%arg0: i32, %arg1: memref<8x128xf32, #tpu.memory_space<vmem>>, %arg2: memref<128x128xf32, #tpu.memory_space<vmem>>, %arg3: memref<1x128xf32, #tpu.memory_space<vmem>>, %arg4: memref<128x128xf32, #tpu.memory_space<vmem>>, %arg5: memref<1x128xf32, #tpu.memory_space<vmem>>, %arg6: memref<8x128xf32, #tpu.memory_space<vmem>>) attributes {dimension_semantics = [#tpu.dimension_semantics<parallel>], iteration_bounds = array<i64: 3>, scalar_prefetch = 0 : i64, scratch_operands = 0 : i64, tpu.core_type = #tpu.core_type<tc>, window_params = [{transform_indices = @transform_0, window_bounds = array<i64: 8, 128>}, {pipeline_mode = #tpu.pipeline_mode<synchronous>, transform_indices = @transform_1, window_bounds = array<i64: 128, 128>}, {pipeline_mode = #tpu.pipeline_mode<synchronous>, transform_indices = @transform_2, window_bounds = array<i64: 1, 128>}, {pipeline_mode = #tpu.pipeline_mode<synchronous>, transform_indices = @transform_3, window_bounds = array<i64: 128, 128>}, {pipeline_mode = #tpu.pipeline_mode<synchronous>, transform_indices = @transform_4, window_bounds = array<i64: 1, 128>}, {transform_indices = @transform_5, window_bounds = array<i64: 8, 128>}]} {
    %c0 = arith.constant 0 : index
    %c0_0 = arith.constant 0 : index
    %0 = vector.load %arg1[%c0, %c0_0] : memref<8x128xf32, #tpu.memory_space<vmem>>, vector<8x128xf32>
    %c0_1 = arith.constant 0 : index
    %c0_2 = arith.constant 0 : index
    %1 = vector.load %arg2[%c0_1, %c0_2] : memref<128x128xf32, #tpu.memory_space<vmem>>, vector<128x128xf32>
    %cst = arith.constant dense<0.000000e+00> : vector<8x128xf32>
    %2 = tpu.matmul %0, %1, %cst {dimension_numbers = #tpu.dot_dimension_numbers<[1], [0], [0], [1], [0, 0, 1, 1], [], []>} : vector<8x128xf32>, vector<128x128xf32>, vector<8x128xf32> -> vector<8x128xf32>
    %c0_3 = arith.constant 0 : index
    %c0_4 = arith.constant 0 : index
    %3 = vector.load %arg3[%c0_3, %c0_4] : memref<1x128xf32, #tpu.memory_space<vmem>>, vector<1x128xf32>
    %4 = vector.broadcast %3 : vector<1x128xf32> to vector<8x128xf32>
    %5 = arith.addf %2, %4 : vector<8x128xf32>
    %cst_5 = arith.constant 0.000000e+00 : f32
    %6 = vector.broadcast %cst_5 : f32 to vector<8x128xf32>
    %7 = arith.cmpf ogt, %5, %6 : vector<8x128xf32>
    %cst_6 = arith.constant 0.00999999977 : f32
    %8 = vector.broadcast %cst_6 : f32 to vector<8x128xf32>
    %9 = arith.mulf %8, %5 : vector<8x128xf32>
    %10 = arith.select %7, %5, %9 : vector<8x128xi1>, vector<8x128xf32>
    %c0_7 = arith.constant 0 : index
    %c0_8 = arith.constant 0 : index
    %11 = vector.load %arg4[%c0_7, %c0_8] : memref<128x128xf32, #tpu.memory_space<vmem>>, vector<128x128xf32>
    %cst_9 = arith.constant dense<0.000000e+00> : vector<8x128xf32>
    %12 = tpu.matmul %10, %11, %cst_9 {dimension_numbers = #tpu.dot_dimension_numbers<[1], [0], [0], [1], [0, 0, 1, 1], [], []>} : vector<8x128xf32>, vector<128x128xf32>, vector<8x128xf32> -> vector<8x128xf32>
    %c0_10 = arith.constant 0 : index
    %c0_11 = arith.constant 0 : index
    %13 = vector.load %arg5[%c0_10, %c0_11] : memref<1x128xf32, #tpu.memory_space<vmem>>, vector<1x128xf32>
    %14 = vector.broadcast %13 : vector<1x128xf32> to vector<8x128xf32>
    %15 = arith.addf %12, %14 : vector<8x128xf32>
    %c8_i32 = arith.constant 8 : i32
    %16 = arith.muli %arg0, %c8_i32 : i32
    %17 = tpu.iota {dimensions = array<i32: 0>} : vector<8x128xi32>
    %18 = vector.broadcast %16 : i32 to vector<8x128xi32>
    %19 = arith.addi %18, %17 : vector<8x128xi32>
    %c20_i32 = arith.constant 20 : i32
    %20 = vector.broadcast %c20_i32 : i32 to vector<8x128xi32>
    %21 = arith.cmpi slt, %19, %20 : vector<8x128xi32>
    %22 = arith.extui %21 : vector<8x128xi1> to vector<8x128xi32>
    %23 = arith.sitofp %22 : vector<8x128xi32> to vector<8x128xf32>
    %24 = arith.mulf %15, %23 : vector<8x128xf32>
    %cst_12 = arith.constant dense<0.000000e+00> : vector<128xf32>
    %25 = vector.multi_reduction <add>, %24, %cst_12 [0] : vector<8x128xf32> to vector<128xf32>
    %26 = vector.shape_cast %25 : vector<128xf32> to vector<1x128xf32>
    %27 = arith.mulf %24, %15 : vector<8x128xf32>
    %cst_13 = arith.constant dense<0.000000e+00> : vector<128xf32>
    %28 = vector.multi_reduction <add>, %27, %cst_13 [0] : vector<8x128xf32> to vector<128xf32>
    %29 = vector.shape_cast %28 : vector<128xf32> to vector<1x128xf32>
    %cst_14 = arith.constant 0.000000e+00 : f32
    %30 = vector.broadcast %cst_14 : f32 to vector<6x128xf32>
    %31 = tpu.concatenate %26, %29, %30 in 0 : vector<1x128xf32>, vector<1x128xf32>, vector<6x128xf32> -> vector<8x128xf32>
    %c0_15 = arith.constant 0 : index
    %c0_16 = arith.constant 0 : index
    %32 = vector.load %arg6[%c0_15, %c0_16] : memref<8x128xf32, #tpu.memory_space<vmem>>, vector<8x128xf32>
    tpu.vector_store %arg6[%c0_15, %c0_16], %31 {strides = array<i32>} : memref<8x128xf32, #tpu.memory_space<vmem>>, vector<8x128xf32>,
    return
  }
  func.func @transform_0(%arg0: i32) -> (i32, i32) {
    %c0_i32 = arith.constant 0 : i32
    %c0_i32_0 = arith.constant 0 : i32
    return %arg0, %c0_i32 : i32, i32
  }
  func.func @transform_1(%arg0: i32) -> (i32, i32) {
    %c0_i32 = arith.constant 0 : i32
    %c0_i32_0 = arith.constant 0 : i32
    %c0_i32_1 = arith.constant 0 : i32
    return %c0_i32, %c0_i32_0 : i32, i32
  }
  func.func @transform_2(%arg0: i32) -> (i32, i32) {
    %c0_i32 = arith.constant 0 : i32
    %c0_i32_0 = arith.constant 0 : i32
    %c0_i32_1 = arith.constant 0 : i32
    return %c0_i32, %c0_i32_0 : i32, i32
  }
  func.func @transform_3(%arg0: i32) -> (i32, i32) {
    %c0_i32 = arith.constant 0 : i32
    %c0_i32_0 = arith.constant 0 : i32
    %c0_i32_1 = arith.constant 0 : i32
    return %c0_i32, %c0_i32_0 : i32, i32
  }
  func.func @transform_4(%arg0: i32) -> (i32, i32) {
    %c0_i32 = arith.constant 0 : i32
    %c0_i32_0 = arith.constant 0 : i32
    %c0_i32_1 = arith.constant 0 : i32
    return %c0_i32, %c0_i32_0 : i32, i32
  }
  func.func @transform_5(%arg0: i32) -> (i32, i32) {
    %c0_i32 = arith.constant 0 : i32
    %c0_i32_0 = arith.constant 0 : i32
    return %arg0, %c0_i32 : i32, i32
  }
}

</mosaic_0001>

<llo_original>
// kernel: tpu_custom_call.1
$region0: #{tpu_custom_call.1}
  #allocation0 [shape = 'u32[]', space=smem, size = 0x4, offset = 0x4, fixed_abs, tag = 'smem constant byte address 0x4 - core index']
  #allocation1 [shape = 'u32[144,128]{1,0:T(1,128)}', space=vmem, size = 0x12000, scoped, tag = 'internal scratch']
  %s0 = inlined_call_operand.hbm [shape: f32[24,128], index: 0, kind: input, shape index: {}]
  %s1 = inlined_call_operand.hbm [shape: f32[128,128], index: 1, kind: input, shape index: {}]
  %s2 = inlined_call_operand.vmem [shape: f32[1,128], index: 2, kind: input, shape index: {}]
  %s3 = inlined_call_operand.hbm [shape: f32[128,128], index: 3, kind: input, shape index: {}]
  %s4 = inlined_call_operand.vmem [shape: f32[1,128], index: 4, kind: input, shape index: {}]
  %s5 = inlined_call_operand.hbm [shape: f32[24,128], index: 5, kind: output, shape index: {}]
  %s6 = sld [smem:[#allocation0]]
  $region65: #{tpu_custom_call.1} parent=0
    _
  %s8 = ssub.s32 1, %s6
  %s9 = scalar_select 0, %s8, %s6
  $region1: #{tpu_custom_call.1} parent=0
    #allocation2 [shape = 'u8[8192]{0}', space=vmem, size = 0x2000, scoped, tag = 'input window, operand 0']
    #allocation3 [shape = 's32[2]{0}', space=sflag, size = 0x8, scoped, tag = 'scoped memory for tpu_custom_call.1']
    #allocation4 [shape = 's32[2]{0}', space=sflag, size = 0x8, scoped, tag = 'scoped memory for tpu_custom_call.1']
    #allocation5 [shape = 'u8[65536]{0}', space=vmem, size = 0x10000, scoped, tag = 'input window, operand 1, single buffered']
    #allocation6 [shape = 's32[1]{0}', space=sflag, size = 0x4, scoped, tag = 'scoped memory for tpu_custom_call.1']
    #allocation7 [shape = 'u8[65536]{0}', space=vmem, size = 0x10000, scoped, tag = 'input window, operand 3, single buffered']
    #allocation8 [shape = 'u8[8192]{0}', space=vmem, size = 0x2000, scoped, tag = 'output window, operand 0']
    %10 = vsyncpa [#allocation3], 0
    %s11 = scalar_lea.sflag [#allocation3], 1
    %12 = vsyncpa %s11, 0
    %13 = vsyncpa [#allocation6], 0
    %14 = vsyncpa [#allocation4], 0
    %s15 = scalar_lea.sflag [#allocation4], 1
    %16 = vsyncpa %s15, 0
    loop: start=0, step=1, limit=5
    $region2: #{tpu_custom_call.1} parent=1 // loop_pre_header
      _
    $region3: #{tpu_custom_call.1} parent=1 // loop_header
      %s18 = sphi 0, %s22
      %p19 = scmp.ge.s32.totalorder %s18, 5
      %s28 = sphi 0, %s30
      %s31 = sphi 0, %s28
      %s32 = sphi 0, %s31
      %s48 = sphi 0, %s32
      %s52 = sphi 0, %s52
      %s54 = sphi 0, %s52
      %s55 = sphi 0, %s54
      %s69 = sphi 0, %s55
      %s73 = sphi 0, %s73
      %s75 = sphi 0, %s73
      %s76 = sphi 0, %s75
      %s90 = sphi 0, %s76
      %s94 = sphi 0, %s94
      %s96 = sphi 0, %s94
      %s97 = sphi 0, %s96
      %s111 = sphi 0, %s97
      %s115 = sphi 0, %s115
      %s117 = sphi 0, %s115
      %s118 = sphi 0, %s117
      %s132 = sphi 0, %s118
      %s138 = sphi 0, %s140
      %s141 = sphi 0, %s138
      %s142 = sphi 0, %s141
      %s158 = sphi 0, %s142
    $region4: #{tpu_custom_call.1} parent=1 // loop_header_branch
      %21 = sbr.rel (%p19) target = $region8
    $region5: #{tpu_custom_call.1} parent=1 // loop_body
      %s23 = ssub.s32 %s18, 1
      %s24 = ssub.s32 %s18, 2
      %s25 = sadd.s32 %s18, 1
      %s26 = ssub.s32 %s18, %s25
      %p27 = scmp.eq.s32.totalorder %s26, 0
      %s29 = sadd.s32 %s28, 1
      %s30 = scalar_select %p27, %s28, %s29
      %p33 = pneg %p27
      %p34 = scmp.eq.s32.totalorder %s18, 2
      %p35 = por %p33, %p34
      %p36 = scmp.ne.s32.totalorder %s28, %s31
      %p37 = scmp.eq.s32.totalorder %s18, 0
      %p38 = por %p36, %p37
      %p39 = scmp.ne.s32.totalorder %s28, %s31
      %p40 = scmp.eq.s32.totalorder %s23, 2
      %p41 = por %p39, %p40
      %p42 = scmp.ne.s32.totalorder %s31, %s32
      %p43 = scmp.eq.s32.totalorder %s23, 0
      %p44 = por %p42, %p43
      %p45 = scmp.ne.s32.totalorder %s31, %s32
      %p46 = scmp.eq.s32.totalorder %s24, 2
      %p47 = por %p45, %p46
      %p49 = scmp.ne.s32.totalorder %s32, %s48
      %p50 = scmp.eq.s32.totalorder %s24, 0
      %p51 = por %p49, %p50
      %s53 = sadd.s32 %s52, 1
      %p56 = scmp.eq.s32.totalorder %s18, 2
      %p57 = scmp.ne.s32.totalorder %s52, %s54
      %p58 = scmp.eq.s32.totalorder %s18, 0
      %p59 = por %p57, %p58
      %p60 = scmp.ne.s32.totalorder %s52, %s54
      %p61 = scmp.eq.s32.totalorder %s23, 2
      %p62 = por %p60, %p61
      %p63 = scmp.ne.s32.totalorder %s54, %s55
      %p64 = scmp.eq.s32.totalorder %s23, 0
      %p65 = por %p63, %p64
      %p66 = scmp.ne.s32.totalorder %s54, %s55
      %p67 = scmp.eq.s32.totalorder %s24, 2
      %p68 = por %p66, %p67
      %p70 = scmp.ne.s32.totalorder %s55, %s69
      %p71 = scmp.eq.s32.totalorder %s24, 0
      %p72 = por %p70, %p71
      %s74 = sadd.s32 %s73, 1
      %p77 = scmp.eq.s32.totalorder %s18, 2
      %p78 = scmp.ne.s32.totalorder %s73, %s75
      %p79 = scmp.eq.s32.totalorder %s18, 0
      %p80 = por %p78, %p79
      %p81 = scmp.ne.s32.totalorder %s73, %s75
      %p82 = scmp.eq.s32.totalorder %s23, 2
      %p83 = por %p81, %p82
      %p84 = scmp.ne.s32.totalorder %s75, %s76
      %p85 = scmp.eq.s32.totalorder %s23, 0
      %p86 = por %p84, %p85
      %p87 = scmp.ne.s32.totalorder %s75, %s76
      %p88 = scmp.eq.s32.totalorder %s24, 2
      %p89 = por %p87, %p88
      %p91 = scmp.ne.s32.totalorder %s76, %s90
      %p92 = scmp.eq.s32.totalorder %s24, 0
      %p93 = por %p91, %p92
      %s95 = sadd.s32 %s94, 1
      %p98 = scmp.eq.s32.totalorder %s18, 2
      %p99 = scmp.ne.s32.totalorder %s94, %s96
      %p100 = scmp.eq.s32.totalorder %s18, 0
      %p101 = por %p99, %p100
      %p102 = scmp.ne.s32.totalorder %s94, %s96
      %p103 = scmp.eq.s32.totalorder %s23, 2
      %p104 = por %p102, %p103
      %p105 = scmp.ne.s32.totalorder %s96, %s97
      %p106 = scmp.eq.s32.totalorder %s23, 0
      %p107 = por %p105, %p106
      %p108 = scmp.ne.s32.totalorder %s96, %s97
      %p109 = scmp.eq.s32.totalorder %s24, 2
      %p110 = por %p108, %p109
      %p112 = scmp.ne.s32.totalorder %s97, %s111
      %p113 = scmp.eq.s32.totalorder %s24, 0
      %p114 = por %p112, %p113
      %s116 = sadd.s32 %s115, 1
      %p119 = scmp.eq.s32.totalorder %s18, 2
      %p120 = scmp.ne.s32.totalorder %s115, %s117
      %p121 = scmp.eq.s32.totalorder %s18, 0
      %p122 = por %p120, %p121
      %p123 = scmp.ne.s32.totalorder %s115, %s117
      %p124 = scmp.eq.s32.totalorder %s23, 2
      %p125 = por %p123, %p124
      %p126 = scmp.ne.s32.totalorder %s117, %s118
      %p127 = scmp.eq.s32.totalorder %s23, 0
      %p128 = por %p126, %p127
      %p129 = scmp.ne.s32.totalorder %s117, %s118
      %p130 = scmp.eq.s32.totalorder %s24, 2
      %p131 = por %p129, %p130
      %p133 = scmp.ne.s32.totalorder %s118, %s132
      %p134 = scmp.eq.s32.totalorder %s24, 0
      %p135 = por %p133, %p134
      %s136 = ssub.s32 %s18, %s25
      %p137 = scmp.eq.s32.totalorder %s136, 0
      %s139 = sadd.s32 %s138, 1
      %s140 = scalar_select %p137, %s138, %s139
      %p143 = pneg %p137
      %p144 = scmp.eq.s32.totalorder %s18, 2
      %p145 = por %p143, %p144
      %p146 = scmp.ne.s32.totalorder %s138, %s141
      %p147 = scmp.eq.s32.totalorder %s18, 0
      %p148 = por %p146, %p147
      %p149 = scmp.ne.s32.totalorder %s138, %s141
      %p150 = scmp.eq.s32.totalorder %s23, 2
      %p151 = por %p149, %p150
      %p152 = scmp.ne.s32.totalorder %s141, %s142
      %p153 = scmp.eq.s32.totalorder %s23, 0
      %p154 = por %p152, %p153
      %p155 = scmp.ne.s32.totalorder %s141, %s142
      %p156 = scmp.eq.s32.totalorder %s24, 2
      %p157 = por %p155, %p156
      %p159 = scmp.ne.s32.totalorder %s142, %s158
      %p160 = scmp.eq.s32.totalorder %s24, 0
      %p161 = por %p159, %p160
      %p162 = scmp.le.s32.totalorder 1, %s18
      %p163 = scmp.lt.s32.totalorder %s18, 4
      %p164 = pnand %p162, %p163
      %p165 = pneg %p164
      // Predicated region
      $region9: #{tpu_custom_call.1} parent=5 // pred_check
        _
      $region10: #{tpu_custom_call.1} parent=5 // pred_check_branch
        %167 = sbr.rel (%p164) target = $region12
      $region11: #{tpu_custom_call.1} parent=5 // pred_region
        %s168 = ssub.s32 %s18, 1
        // Predicated region
        $region13: #{tpu_custom_call.1} parent=11 // pred_check
          %p169 = pneg %p65
        $region14: #{tpu_custom_call.1} parent=11 // pred_check_branch
          %171 = sbr.rel (%p169) target = $region16
        $region15: #{tpu_custom_call.1} parent=11 // pred_region
          %s173 = ssub.s32 2048, 2048
          %174 = vsyncadd [#allocation6], %s173
          %s175 = sshll.u32 [#allocation5], 4
          %s176 = int_to_ptr.vmem [resolvable:$true] %s175
          %181 = dma.hbm_to_vmem [thread:$0]  %s1, 2048, %s176, [#allocation6], 128, 128, 8
        $region16: #{tpu_custom_call.1} parent=11 // pred_fallthru
          _
        // Predicated region
        $region17: #{tpu_custom_call.1} parent=11 // pred_check
          %p182 = pneg %p86
        $region18: #{tpu_custom_call.1} parent=11 // pred_check_branch
          %184 = sbr.rel (%p182) target = $region20
        $region19: #{tpu_custom_call.1} parent=11 // pred_region
          _
        $region20: #{tpu_custom_call.1} parent=11 // pred_fallthru
          _
        // Predicated region
        $region21: #{tpu_custom_call.1} parent=11 // pred_check
          %p185 = pneg %p107
        $region22: #{tpu_custom_call.1} parent=11 // pred_check_branch
          %187 = sbr.rel (%p185) target = $region24
        $region23: #{tpu_custom_call.1} parent=11 // pred_region
          %s189 = ssub.s32 2048, 2048
          %190 = vsyncadd [#allocation6], %s189
          %s191 = sshll.u32 [#allocation7], 4
          %s192 = int_to_ptr.vmem [resolvable:$true] %s191
          %197 = dma.hbm_to_vmem [thread:$0]  %s3, 2048, %s192, [#allocation6], 128, 128, 8
        $region24: #{tpu_custom_call.1} parent=11 // pred_fallthru
          _
        // Predicated region
        $region25: #{tpu_custom_call.1} parent=11 // pred_check
          %p198 = pneg %p128
        $region26: #{tpu_custom_call.1} parent=11 // pred_check_branch
          %200 = sbr.rel (%p198) target = $region28
        $region27: #{tpu_custom_call.1} parent=11 // pred_region
          _
        $region28: #{tpu_custom_call.1} parent=11 // pred_fallthru
          _
      $region12: #{tpu_custom_call.1} parent=5 // pred_fallthru
        _
      %p201 = scmp.lt.s32.totalorder %s18, 3
      // Predicated region
      $region29: #{tpu_custom_call.1} parent=5 // pred_check
        %p202 = pneg %p201
      $region30: #{tpu_custom_call.1} parent=5 // pred_check_branch
        %204 = sbr.rel (%p202) target = $region32
      $region31: #{tpu_custom_call.1} parent=5 // pred_region
        // Predicated region
        $region33: #{tpu_custom_call.1} parent=31 // pred_check
          %p205 = pneg %p38
        $region34: #{tpu_custom_call.1} parent=31 // pred_check_branch
          %207 = sbr.rel (%p205) target = $region36
        $region35: #{tpu_custom_call.1} parent=31 // pred_region
          %s208 = sand.u32 %s28, 1
          %s209 = scalar_lea.sflag [#allocation3], %s208
          %s210 = sand.u32 %s28, 1
          %s211 = smul.addr %s210, 8
          %s212 = scalar_lea.vmem [#allocation2], %s211
          %s214 = ssub.s32 128, 128
          %215 = vsyncadd %s209, %s214
          %s216 = smul.addr %s18, 128
          %s217 = scalar_lea.hbm %s0, %s216
          %s219 = sshll.u32 %s212, 4
          %s220 = int_to_ptr.vmem [resolvable:$true] %s219
          %222 = dma.hbm_to_vmem [thread:$0]  %s217, 128, %s220, %s209
        $region36: #{tpu_custom_call.1} parent=31 // pred_fallthru
          _
      $region32: #{tpu_custom_call.1} parent=5 // pred_fallthru
        _
      %p223 = scmp.le.s32.totalorder 1, %s18
      %p224 = scmp.lt.s32.totalorder %s18, 4
      %p225 = pnand %p223, %p224
      %p226 = pneg %p225
      // Predicated region
      $region37: #{tpu_custom_call.1} parent=5 // pred_check
        _
      $region38: #{tpu_custom_call.1} parent=5 // pred_check_branch
        %228 = sbr.rel (%p225) target = $region40
      $region39: #{tpu_custom_call.1} parent=5 // pred_region
        %s229 = ssub.s32 %s18, 1
        %s230 = sand.u32 %s31, 1
        %s231 = scalar_lea.sflag [#allocation3], %s230
        %s232 = sand.u32 %s31, 1
        %s233 = smul.addr %s232, 8
        %s234 = scalar_lea.vmem [#allocation2], %s233
        // Predicated region
        $region41: #{tpu_custom_call.1} parent=39 // pred_check
          %p235 = pneg %p44
        $region42: #{tpu_custom_call.1} parent=39 // pred_check_branch
          %237 = sbr.rel (%p235) target = $region44
        $region43: #{tpu_custom_call.1} parent=39 // pred_region
          %238 = dma.done %s231, 128
        $region44: #{tpu_custom_call.1} parent=39 // pred_fallthru
          _
        // Predicated region
        $region45: #{tpu_custom_call.1} parent=39 // pred_check
          %p239 = pneg %p65
        $region46: #{tpu_custom_call.1} parent=39 // pred_check_branch
          %241 = sbr.rel (%p239) target = $region48
        $region47: #{tpu_custom_call.1} parent=39 // pred_region
          %242 = dma.done [#allocation6], 2048
        $region48: #{tpu_custom_call.1} parent=39 // pred_fallthru
          _
        // Predicated region
        $region49: #{tpu_custom_call.1} parent=39 // pred_check
          %p243 = pneg %p107
        $region50: #{tpu_custom_call.1} parent=39 // pred_check_branch
          %245 = sbr.rel (%p243) target = $region52
        $region51: #{tpu_custom_call.1} parent=39 // pred_region
          %246 = dma.done [#allocation6], 2048
        $region52: #{tpu_custom_call.1} parent=39 // pred_fallthru
          _
        %s247 = sand.u32 %s31, 1
        %s248 = scalar_lea.sflag [#allocation3], %s247
        %s249 = sand.u32 %s31, 1
        %s250 = smul.addr %s249, 8
        %s251 = scalar_lea.vmem [#allocation2], %s250
        %p252 = pneg %p44
        %p253 = pneg %p41
        %p254 = pneg %p65
        %p255 = pneg %p62
        %p256 = pneg %p86
        %p257 = pneg %p83
        %p258 = pneg %p107
        %p259 = pneg %p104
        %p260 = pneg %p128
        %p261 = pneg %p125
        %p262 = pneg %p154
        %p263 = pneg %p151
        %s264 = sand.u32 %s141, 1
        %s265 = scalar_lea.sflag [#allocation4], %s264
        %s266 = sand.u32 %s141, 1
        %s267 = smul.addr %s266, 8
        %s268 = scalar_lea.vmem [#allocation8], %s267
        %v269 = vld [vmem:[%s234] sm:$0xff]
        %v270 = vld [vmem:[#allocation5] sm:$0xff]
        %v271 = vld [vmem:[#allocation5 + $0x8] sm:$0xff]
        %v272 = vld [vmem:[#allocation5 + $0x10] sm:$0xff]
        %v273 = vld [vmem:[#allocation5 + $0x18] sm:$0xff]
        %v274 = vld [vmem:[#allocation5 + $0x20] sm:$0xff]
        %v275 = vld [vmem:[#allocation5 + $0x28] sm:$0xff]
        %v276 = vld [vmem:[#allocation5 + $0x30] sm:$0xff]
        %v277 = vld [vmem:[#allocation5 + $0x38] sm:$0xff]
        %v278 = vld [vmem:[#allocation5 + $0x40] sm:$0xff]
        %v279 = vld [vmem:[#allocation5 + $0x48] sm:$0xff]
        %v280 = vld [vmem:[#allocation5 + $0x50] sm:$0xff]
        %v281 = vld [vmem:[#allocation5 + $0x58] sm:$0xff]
        %v282 = vld [vmem:[#allocation5 + $0x60] sm:$0xff]
        %v283 = vld [vmem:[#allocation5 + $0x68] sm:$0xff]
        %v284 = vld [vmem:[#allocation5 + $0x70] sm:$0xff]
        %v285 = vld [vmem:[#allocation5 + $0x78] sm:$0xff]
        %v286 = vld [vmem:[%s2] sm:$0x1]
        %v288 = vlaneseq
        %v289 = vshrl.u32 %v288, 7
        %v290 = vsub.s32 0, %v289
        %v291 = vrot.slane %v286, %v290
        %293 = vmatprep.subr.mxu0 0.0
        %294 = vmatpush1.msra.mxu0 %v270
        %295 = vmatprep.subr.mxu0 0.0
        %296 = vmatpush1.msra.mxu0 %v271
        %297 = vmatprep.subr.mxu0 0.0
        %298 = vmatpush1.msra.mxu0 %v272
        %299 = vmatprep.subr.mxu0 0.0
        %300 = vmatpush1.msra.mxu0 %v273
        %301 = vmatprep.subr.mxu0 0.0
        %302 = vmatpush1.msra.mxu0 %v274
        %303 = vmatprep.subr.mxu0 0.0
        %304 = vmatpush1.msra.mxu0 %v275
        %305 = vmatprep.subr.mxu0 0.0
        %306 = vmatpush1.msra.mxu0 %v276
        %307 = vmatprep.subr.mxu0 0.0
        %308 = vmatpush1.msra.mxu0 %v277
        %309 = vmatprep.subr.mxu0 0.0
        %310 = vmatpush1.msra.mxu0 %v278
        %311 = vmatprep.subr.mxu0 0.0
        %312 = vmatpush1.msra.mxu0 %v279
        %313 = vmatprep.subr.mxu0 0.0
        %314 = vmatpush1.msra.mxu0 %v280
        %315 = vmatprep.subr.mxu0 0.0
        %316 = vmatpush1.msra.mxu0 %v281
        %317 = vmatprep.subr.mxu0 0.0
        %318 = vmatpush1.msra.mxu0 %v282
        %319 = vmatprep.subr.mxu0 0.0
        %320 = vmatpush1.msra.mxu0 %v283
        %321 = vmatprep.subr.mxu0 0.0
        %322 = vmatpush1.msra.mxu0 %v284
        %323 = vmatprep.subr.mxu0 0.0
        %324 = vmatpush1.msra.mxu0 %v285
        %325 = vmatprep.subr.mxu0 0.0
        %326 = vmatpush1.msra.mxu0 0.0
        %327 = vmatprep.subr.mxu0 0.0
        %328 = vmatpush1.msra.mxu0 0.0
        %329 = vmatprep.subr.mxu0 0.0
        %330 = vmatpush1.msra.mxu0 0.0
        %331 = vmatprep.subr.mxu0 0.0
        %332 = vmatpush1.msra.mxu0 0.0
        %333 = vmatprep.subr.mxu0 0.0
        %334 = vmatpush1.msra.mxu0 0.0
        %335 = vmatprep.subr.mxu0 0.0
        %336 = vmatpush1.msra.mxu0 0.0
        %337 = vmatprep.subr.mxu0 0.0
        %338 = vmatpush1.msra.mxu0 0.0
        %339 = vmatprep.subr.mxu0 0.0
        %340 = vmatpush1.msra.mxu0 0.0
        %341 = vmatprep.subr.mxu0 0.0
        %342 = vmatpush1.msra.mxu0 0.0
        %343 = vmatprep.subr.mxu0 0.0
        %344 = vmatpush1.msra.mxu0 0.0
        %345 = vmatprep.subr.mxu0 0.0
        %346 = vmatpush1.msra.mxu0 0.0
        %347 = vmatprep.subr.mxu0 0.0
        %348 = vmatpush1.msra.mxu0 0.0
        %349 = vmatprep.subr.mxu0 0.0
        %350 = vmatpush1.msra.mxu0 0.0
        %351 = vmatprep.subr.mxu0 0.0
        %352 = vmatpush1.msra.mxu0 0.0
        %353 = vmatprep.subr.mxu0 0.0
        %354 = vmatpush1.msra.mxu0 0.0
        %355 = vmatprep.subr.mxu0 0.0
        %356 = vmatpush1.msra.mxu0 0.0
        %357 = vmatprep.mubr.f32.mxu0 0.0
        %358 = vmatmul.mubr.f32.gmra.mrb[0].mxu0 %v269
        %v359 = vpop.f32.mrb[0].mxu0
        %v360 = vadd.f32 %v291, %v359
        %v361 = vpop.f32.mrb[0].mxu0
        %362 = vdwg.mxu0
        %vm363 = vcmp.gt.f32.partialorder %v360, 0.0
        %v364 = vmul.f32 %v360, 0.01
        %v365 = vsel %vm363, %v360, %v364
        %v366 = vld [vmem:[#allocation7] sm:$0xff]
        %v367 = vld [vmem:[#allocation7 + $0x8] sm:$0xff]
        %v368 = vld [vmem:[#allocation7 + $0x10] sm:$0xff]
        %v369 = vld [vmem:[#allocation7 + $0x18] sm:$0xff]
        %v370 = vld [vmem:[#allocation7 + $0x20] sm:$0xff]
        %v371 = vld [vmem:[#allocation7 + $0x28] sm:$0xff]
        %v372 = vld [vmem:[#allocation7 + $0x30] sm:$0xff]
        %v373 = vld [vmem:[#allocation7 + $0x38] sm:$0xff]
        %v374 = vld [vmem:[#allocation7 + $0x40] sm:$0xff]
        %v375 = vld [vmem:[#allocation7 + $0x48] sm:$0xff]
        %v376 = vld [vmem:[#allocation7 + $0x50] sm:$0xff]
        %v377 = vld [vmem:[#allocation7 + $0x58] sm:$0xff]
        %v378 = vld [vmem:[#allocation7 + $0x60] sm:$0xff]
        %v379 = vld [vmem:[#allocation7 + $0x68] sm:$0xff]
        %v380 = vld [vmem:[#allocation7 + $0x70] sm:$0xff]
        %v381 = vld [vmem:[#allocation7 + $0x78] sm:$0xff]
        %v382 = vld [vmem:[%s4] sm:$0x1]
        %v384 = vlaneseq
        %v385 = vshrl.u32 %v384, 7
        %v386 = vsub.s32 0, %v385
        %v387 = vrot.slane %v382, %v386
        %389 = vmatprep.subr.mxu0 0.0
        %390 = vmatpush1.msra.mxu0 %v366
        %391 = vmatprep.subr.mxu0 0.0
        %392 = vmatpush1.msra.mxu0 %v367
        %393 = vmatprep.subr.mxu0 0.0
        %394 = vmatpush1.msra.mxu0 %v368
        %395 = vmatprep.subr.mxu0 0.0
        %396 = vmatpush1.msra.mxu0 %v369
        %397 = vmatprep.subr.mxu0 0.0
        %398 = vmatpush1.msra.mxu0 %v370
        %399 = vmatprep.subr.mxu0 0.0
        %400 = vmatpush1.msra.mxu0 %v371
        %401 = vmatprep.subr.mxu0 0.0
        %402 = vmatpush1.msra.mxu0 %v372
        %403 = vmatprep.subr.mxu0 0.0
        %404 = vmatpush1.msra.mxu0 %v373
        %405 = vmatprep.subr.mxu0 0.0
        %406 = vmatpush1.msra.mxu0 %v374
        %407 = vmatprep.subr.mxu0 0.0
        %408 = vmatpush1.msra.mxu0 %v375
        %409 = vmatprep.subr.mxu0 0.0
        %410 = vmatpush1.msra.mxu0 %v376
        %411 = vmatprep.subr.mxu0 0.0
        %412 = vmatpush1.msra.mxu0 %v377
        %413 = vmatprep.subr.mxu0 0.0
        %414 = vmatpush1.msra.mxu0 %v378
        %415 = vmatprep.subr.mxu0 0.0
        %416 = vmatpush1.msra.mxu0 %v379
        %417 = vmatprep.subr.mxu0 0.0
        %418 = vmatpush1.msra.mxu0 %v380
        %419 = vmatprep.subr.mxu0 0.0
        %420 = vmatpush1.msra.mxu0 %v381
        %421 = vmatprep.subr.mxu0 0.0
        %422 = vmatpush1.msra.mxu0 0.0
        %423 = vmatprep.subr.mxu0 0.0
        %424 = vmatpush1.msra.mxu0 0.0
        %425 = vmatprep.subr.mxu0 0.0
        %426 = vmatpush1.msra.mxu0 0.0
        %427 = vmatprep.subr.mxu0 0.0
        %428 = vmatpush1.msra.mxu0 0.0
        %429 = vmatprep.subr.mxu0 0.0
        %430 = vmatpush1.msra.mxu0 0.0
        %431 = vmatprep.subr.mxu0 0.0
        %432 = vmatpush1.msra.mxu0 0.0
        %433 = vmatprep.subr.mxu0 0.0
        %434 = vmatpush1.msra.mxu0 0.0
        %435 = vmatprep.subr.mxu0 0.0
        %436 = vmatpush1.msra.mxu0 0.0
        %437 = vmatprep.subr.mxu0 0.0
        %438 = vmatpush1.msra.mxu0 0.0
        %439 = vmatprep.subr.mxu0 0.0
        %440 = vmatpush1.msra.mxu0 0.0
        %441 = vmatprep.subr.mxu0 0.0
        %442 = vmatpush1.msra.mxu0 0.0
        %443 = vmatprep.subr.mxu0 0.0
        %444 = vmatpush1.msra.mxu0 0.0
        %445 = vmatprep.subr.mxu0 0.0
        %446 = vmatpush1.msra.mxu0 0.0
        %447 = vmatprep.subr.mxu0 0.0
        %448 = vmatpush1.msra.mxu0 0.0
        %449 = vmatprep.subr.mxu0 0.0
        %450 = vmatpush1.msra.mxu0 0.0
        %451 = vmatprep.subr.mxu0 0.0
        %452 = vmatpush1.msra.mxu0 0.0
        %453 = vmatprep.mubr.f32.mxu0 0.0
        %454 = vmatmul.mubr.f32.gmra.mrb[0].mxu0 %v365
        %v455 = vpop.f32.mrb[0].mxu0
        %v456 = vadd.f32 %v387, %v455
        %v457 = vpop.f32.mrb[0].mxu0
        %458 = vdwg.mxu0
        %s459 = smul.u32 %s23, 8
        %v460 = vlaneseq
        %v461 = vshrl.u32 %v460, 7
        %v462 = vstv %s459
        %v463 = vadd.s32 %v462, %v461
        %vm464 = vcmp.lt.s32.totalorder %v463, 20
        %v465 = vsel %vm464, 1, 0
        %v466 = vcvt.s32.f32 %v465
        %v467 = vmul.f32 %v456, %v466
        %v468 = vrot.slane %v467, 4
        %v469 = vadd.f32 %v467, %v468
        %v470 = vrot.slane %v469, 2
        %v471 = vadd.f32 %v469, %v470
        %v472 = vrot.slane %v471, 1
        %v473 = vadd.f32 %v471, %v472
        %v474 = vmul.f32 %v467, %v456
        %v475 = vrot.slane %v474, 4
        %v476 = vadd.f32 %v474, %v475
        %v477 = vrot.slane %v476, 2
        %v478 = vadd.f32 %v476, %v477
        %v479 = vrot.slane %v478, 1
        %v480 = vadd.f32 %v478, %v479
        %vm481 = vcmask 1040384
        %v482 = vsel %vm481, %v473, %v480
        %vm483 = vcmask 1041408
        %v484 = vsel %vm483, %v482, 0.0
        %485 = vst [vmem:[%s268] sm:$0xff] %v484
        %s486 = sand.u32 %s141, 1
        %s487 = scalar_lea.sflag [#allocation4], %s486
        %s488 = sand.u32 %s141, 1
        %s489 = smul.addr %s488, 8
        %s490 = scalar_lea.vmem [#allocation8], %s489
        // Predicated region
        $region53: #{tpu_custom_call.1} parent=39 // pred_check
          %p491 = pneg %p151
        $region54: #{tpu_custom_call.1} parent=39 // pred_check_branch
          %493 = sbr.rel (%p491) target = $region56
        $region55: #{tpu_custom_call.1} parent=39 // pred_region
          %s495 = ssub.s32 128, 128
          %496 = vsyncadd %s487, %s495
          %s497 = smul.addr %s23, 128
          %s498 = scalar_lea.hbm %s5, %s497
          %s500 = sshll.u32 %s490, 4
          %s501 = int_to_ptr.vmem [resolvable:$true] %s500
          %503 = dma.vmem_to_hbm [thread:$0]  %s501, 128, %s498, %s487
        $region56: #{tpu_custom_call.1} parent=39 // pred_fallthru
          _
      $region40: #{tpu_custom_call.1} parent=5 // pred_fallthru
        _
      %p504 = scmp.le.s32.totalorder 2, %s18
      // Predicated region
      $region57: #{tpu_custom_call.1} parent=5 // pred_check
        %p505 = pneg %p504
      $region58: #{tpu_custom_call.1} parent=5 // pred_check_branch
        %507 = sbr.rel (%p505) target = $region60
      $region59: #{tpu_custom_call.1} parent=5 // pred_region
        %s508 = ssub.s32 %s18, 2
        // Predicated region
        $region61: #{tpu_custom_call.1} parent=59 // pred_check
          %p509 = pneg %p157
        $region62: #{tpu_custom_call.1} parent=59 // pred_check_branch
          %511 = sbr.rel (%p509) target = $region64
        $region63: #{tpu_custom_call.1} parent=59 // pred_region
          %s512 = sand.u32 %s142, 1
          %s513 = scalar_lea.sflag [#allocation4], %s512
          %s514 = sand.u32 %s142, 1
          %s515 = smul.addr %s514, 8
          %s516 = scalar_lea.vmem [#allocation8], %s515
          %517 = dma.done %s513, 128
        $region64: #{tpu_custom_call.1} parent=59 // pred_fallthru
          _
      $region60: #{tpu_custom_call.1} parent=5 // pred_fallthru
        _
    $region6: #{tpu_custom_call.1} parent=1 // loop_footer
      %s22 = sadd.s32 1, %s18
    $region7: #{tpu_custom_call.1} parent=1 // loop_footer_branch
      %17 = sbr.rel target = $region3
    $region8: #{tpu_custom_call.1} parent=1 // loop_exit
      _
    %518 = vsyncpa [#allocation3], 1
    %s519 = scalar_lea.sflag [#allocation3], 1
    %520 = vsyncpa %s519, 1
    %521 = vsyncpa [#allocation6], 1
    %522 = vsyncpa [#allocation4], 1
    %s523 = scalar_lea.sflag [#allocation4], 1
    %524 = vsyncpa %s523, 1

</llo_original>
